<compile_context>
chip_gen: v7x
topology: tpu7x:2x2x1
jax: 0.10.0
libtpu: 0.0.40
codegen_flags: <defaults>
</compile_context>

<pallas_src>
import jax
import jax.numpy as jnp
from jax.experimental import pallas as pl
from jax.experimental.pallas import tpu as pltpu


def additive_spline_kernel(betas_ref, bias_ref, xt_ref, o_ref):
    # betas_ref: SMEM (nb,), bias_ref: SMEM (1,)
    # xt_ref:    VMEM (nb, TM)  -- samples along lanes
    # o_ref:     VMEM (1, TM)   -- lane-dense output slab
    nb, tm = xt_ref.shape
    acc = jnp.full((1, tm), bias_ref[0], dtype=jnp.float32)
    # Static unroll over the (small, fixed) number of basis functions: pure
    # VPU multiply-adds, scalar coefficients read from SMEM.
    for k in range(nb):
        acc = acc + betas_ref[k] * xt_ref[k:k + 1, :]
    o_ref[...] = acc


def additive_spline_forward(x1, x2, beta1, beta2, bias, *, tm=2048):
    """y = bias + x1 @ beta1 + x2 @ beta2 via a tiled Pallas TPU kernel."""
    n, nb1 = x1.shape
    n2, nb2 = x2.shape
    assert n == n2, "X1 / X2 sample counts must match"
    nb = nb1 + nb2

    # Layout plumbing (wrapper-side): concat basis columns, transpose so the
    # sample dimension maps to lanes, pad samples to a multiple of the tile.
    xt = jnp.concatenate([x1, x2], axis=1).astype(jnp.float32).T  # (nb, n)

    tm = max(128, (int(tm) // 128) * 128)          # tile must be a 128 multiple
    n_pad = pl.cdiv(n, tm) * tm
    if n_pad != n:
        xt = jnp.pad(xt, ((0, 0), (0, n_pad - n)))

    betas = jnp.concatenate(
        [beta1.reshape(-1), beta2.reshape(-1)]).astype(jnp.float32)   # (nb,)
    bias_arr = jnp.reshape(bias, (1,)).astype(jnp.float32)

    grid = (n_pad // tm,)

    out = pl.pallas_call(
        additive_spline_kernel,
        out_shape=jax.ShapeDtypeStruct((1, n_pad), jnp.float32),
        grid=grid,
        in_specs=[
            pl.BlockSpec(memory_space=pltpu.MemorySpace.SMEM),   # betas
            pl.BlockSpec(memory_space=pltpu.MemorySpace.SMEM),   # bias
            pl.BlockSpec((nb, tm), lambda i: (0, i)),            # X^T tile
        ],
        out_specs=pl.BlockSpec((1, tm), lambda i: (0, i)),
        compiler_params=pltpu.CompilerParams(
            dimension_semantics=("parallel",)),
    )(betas, bias_arr, xt)

    # Back to the PyTorch-shaped (n, 1) output, dropping the pad tail.
    return out[0, :n].reshape(n, 1)


if __name__ == "__main__":
    # Shapes matching the original script: n = 300 samples, bs(df=6) -> 6
    # basis columns per covariate. tm=128 -> 3 tiled grid steps (n padded to 384).
    n = 300
    num_basis1 = 6
    num_basis2 = 6

    key = jax.random.PRNGKey(0)
    k_x1, k_x2, k_b1, k_b2 = jax.random.split(key, 4)

    # Synthetic stand-ins for the patsy B-spline design matrices.
    X1 = jax.random.uniform(k_x1, (n, num_basis1), dtype=jnp.float32)
    X2 = jax.random.uniform(k_x2, (n, num_basis2), dtype=jnp.float32)

    # Deterministic parameter init (mirrors torch.randn shapes in __init__).
    beta1 = jax.random.normal(k_b1, (num_basis1, 1), dtype=jnp.float32)
    beta2 = jax.random.normal(k_b2, (num_basis2, 1), dtype=jnp.float32)
    bias = jnp.float32(0.25)

    y = additive_spline_forward(X1, X2, beta1, beta2, bias, tm=128)
    y = jax.block_until_ready(y)

    # Pure-JAX reference check.
    y_ref = bias + X1 @ beta1 + X2 @ beta2
    assert y.shape == (n, 1)
    assert jnp.allclose(y, y_ref, atol=1e-5, rtol=1e-5), "mismatch vs reference"

    print("KERNEL_OK")
</pallas_src>

<mosaic_0001>
module attributes {stable_mosaic.version = 11 : i64} {
  func.func @additive_spline_kernel(%arg0: i32, %arg1: memref<12xf32, #tpu.memory_space<smem>>, %arg2: memref<1xf32, #tpu.memory_space<smem>>, %arg3: memref<12x128xf32, #tpu.memory_space<vmem>>, %arg4: memref<1x128xf32, #tpu.memory_space<vmem>>) attributes {dimension_semantics = [#tpu.dimension_semantics<parallel>], iteration_bounds = array<i64: 3>, scalar_prefetch = 0 : i64, scratch_operands = 0 : i64, tpu.core_type = #tpu.core_type<tc>, window_params = [{transform_indices = @transform_0, window_bounds = array<i64: 12>}, {transform_indices = @transform_1, window_bounds = array<i64: 1>}, {transform_indices = @transform_2, window_bounds = array<i64: 12, 128>}, {transform_indices = @transform_3, window_bounds = array<i64: 1, 128>}]} {
    %c0 = arith.constant 0 : index
    %0 = memref.load %arg2[%c0] : memref<1xf32, #tpu.memory_space<smem>>
    %1 = vector.broadcast %0 : f32 to vector<1x128xf32>
    %c0_0 = arith.constant 0 : index
    %2 = memref.load %arg1[%c0_0] : memref<12xf32, #tpu.memory_space<smem>>
    %c0_1 = arith.constant 0 : index
    %c0_2 = arith.constant 0 : index
    %3 = vector.load %arg3[%c0_1, %c0_2] : memref<12x128xf32, #tpu.memory_space<vmem>>, vector<1x128xf32>
    %4 = vector.broadcast %2 : f32 to vector<1x128xf32>
    %5 = arith.mulf %4, %3 : vector<1x128xf32>
    %6 = arith.addf %1, %5 : vector<1x128xf32>
    %c1 = arith.constant 1 : index
    %7 = memref.load %arg1[%c1] : memref<12xf32, #tpu.memory_space<smem>>
    %c1_3 = arith.constant 1 : index
    %c0_4 = arith.constant 0 : index
    %8 = vector.load %arg3[%c1_3, %c0_4] : memref<12x128xf32, #tpu.memory_space<vmem>>, vector<1x128xf32>
    %9 = vector.broadcast %7 : f32 to vector<1x128xf32>
    %10 = arith.mulf %9, %8 : vector<1x128xf32>
    %11 = arith.addf %6, %10 : vector<1x128xf32>
    %c2 = arith.constant 2 : index
    %12 = memref.load %arg1[%c2] : memref<12xf32, #tpu.memory_space<smem>>
    %c2_5 = arith.constant 2 : index
    %c0_6 = arith.constant 0 : index
    %13 = vector.load %arg3[%c2_5, %c0_6] : memref<12x128xf32, #tpu.memory_space<vmem>>, vector<1x128xf32>
    %14 = vector.broadcast %12 : f32 to vector<1x128xf32>
    %15 = arith.mulf %14, %13 : vector<1x128xf32>
    %16 = arith.addf %11, %15 : vector<1x128xf32>
    %c3 = arith.constant 3 : index
    %17 = memref.load %arg1[%c3] : memref<12xf32, #tpu.memory_space<smem>>
    %c3_7 = arith.constant 3 : index
    %c0_8 = arith.constant 0 : index
    %18 = vector.load %arg3[%c3_7, %c0_8] : memref<12x128xf32, #tpu.memory_space<vmem>>, vector<1x128xf32>
    %19 = vector.broadcast %17 : f32 to vector<1x128xf32>
    %20 = arith.mulf %19, %18 : vector<1x128xf32>
    %21 = arith.addf %16, %20 : vector<1x128xf32>
    %c4 = arith.constant 4 : index
    %22 = memref.load %arg1[%c4] : memref<12xf32, #tpu.memory_space<smem>>
    %c4_9 = arith.constant 4 : index
    %c0_10 = arith.constant 0 : index
    %23 = vector.load %arg3[%c4_9, %c0_10] : memref<12x128xf32, #tpu.memory_space<vmem>>, vector<1x128xf32>
    %24 = vector.broadcast %22 : f32 to vector<1x128xf32>
    %25 = arith.mulf %24, %23 : vector<1x128xf32>
    %26 = arith.addf %21, %25 : vector<1x128xf32>
    %c5 = arith.constant 5 : index
    %27 = memref.load %arg1[%c5] : memref<12xf32, #tpu.memory_space<smem>>
    %c5_11 = arith.constant 5 : index
    %c0_12 = arith.constant 0 : index
    %28 = vector.load %arg3[%c5_11, %c0_12] : memref<12x128xf32, #tpu.memory_space<vmem>>, vector<1x128xf32>
    %29 = vector.broadcast %27 : f32 to vector<1x128xf32>
    %30 = arith.mulf %29, %28 : vector<1x128xf32>
    %31 = arith.addf %26, %30 : vector<1x128xf32>
    %c6 = arith.constant 6 : index
    %32 = memref.load %arg1[%c6] : memref<12xf32, #tpu.memory_space<smem>>
    %c6_13 = arith.constant 6 : index
    %c0_14 = arith.constant 0 : index
    %33 = vector.load %arg3[%c6_13, %c0_14] : memref<12x128xf32, #tpu.memory_space<vmem>>, vector<1x128xf32>
    %34 = vector.broadcast %32 : f32 to vector<1x128xf32>
    %35 = arith.mulf %34, %33 : vector<1x128xf32>
    %36 = arith.addf %31, %35 : vector<1x128xf32>
    %c7 = arith.constant 7 : index
    %37 = memref.load %arg1[%c7] : memref<12xf32, #tpu.memory_space<smem>>
    %c7_15 = arith.constant 7 : index
    %c0_16 = arith.constant 0 : index
    %38 = vector.load %arg3[%c7_15, %c0_16] : memref<12x128xf32, #tpu.memory_space<vmem>>, vector<1x128xf32>
    %39 = vector.broadcast %37 : f32 to vector<1x128xf32>
    %40 = arith.mulf %39, %38 : vector<1x128xf32>
    %41 = arith.addf %36, %40 : vector<1x128xf32>
    %c8 = arith.constant 8 : index
    %42 = memref.load %arg1[%c8] : memref<12xf32, #tpu.memory_space<smem>>
    %c8_17 = arith.constant 8 : index
    %c0_18 = arith.constant 0 : index
    %43 = vector.load %arg3[%c8_17, %c0_18] : memref<12x128xf32, #tpu.memory_space<vmem>>, vector<1x128xf32>
    %44 = vector.broadcast %42 : f32 to vector<1x128xf32>
    %45 = arith.mulf %44, %43 : vector<1x128xf32>
    %46 = arith.addf %41, %45 : vector<1x128xf32>
    %c9 = arith.constant 9 : index
    %47 = memref.load %arg1[%c9] : memref<12xf32, #tpu.memory_space<smem>>
    %c9_19 = arith.constant 9 : index
    %c0_20 = arith.constant 0 : index
    %48 = vector.load %arg3[%c9_19, %c0_20] : memref<12x128xf32, #tpu.memory_space<vmem>>, vector<1x128xf32>
    %49 = vector.broadcast %47 : f32 to vector<1x128xf32>
    %50 = arith.mulf %49, %48 : vector<1x128xf32>
    %51 = arith.addf %46, %50 : vector<1x128xf32>
    %c10 = arith.constant 10 : index
    %52 = memref.load %arg1[%c10] : memref<12xf32, #tpu.memory_space<smem>>
    %c10_21 = arith.constant 10 : index
    %c0_22 = arith.constant 0 : index
    %53 = vector.load %arg3[%c10_21, %c0_22] : memref<12x128xf32, #tpu.memory_space<vmem>>, vector<1x128xf32>
    %54 = vector.broadcast %52 : f32 to vector<1x128xf32>
    %55 = arith.mulf %54, %53 : vector<1x128xf32>
    %56 = arith.addf %51, %55 : vector<1x128xf32>
    %c11 = arith.constant 11 : index
    %57 = memref.load %arg1[%c11] : memref<12xf32, #tpu.memory_space<smem>>
    %c11_23 = arith.constant 11 : index
    %c0_24 = arith.constant 0 : index
    %58 = vector.load %arg3[%c11_23, %c0_24] : memref<12x128xf32, #tpu.memory_space<vmem>>, vector<1x128xf32>
    %59 = vector.broadcast %57 : f32 to vector<1x128xf32>
    %60 = arith.mulf %59, %58 : vector<1x128xf32>
    %61 = arith.addf %56, %60 : vector<1x128xf32>
    %c0_25 = arith.constant 0 : index
    %c0_26 = arith.constant 0 : index
    %62 = vector.load %arg4[%c0_25, %c0_26] : memref<1x128xf32, #tpu.memory_space<vmem>>, vector<1x128xf32>
    tpu.vector_store %arg4[%c0_25, %c0_26], %61 {strides = array<i32>} : memref<1x128xf32, #tpu.memory_space<vmem>>, vector<1x128xf32>,
    return
  }
  func.func @transform_0(%arg0: i32) -> i32 {
    %c0_i32 = arith.constant 0 : i32
    %c0_i32_0 = arith.constant 0 : i32
    return %c0_i32 : i32
  }
  func.func @transform_1(%arg0: i32) -> i32 {
    %c0_i32 = arith.constant 0 : i32
    %c0_i32_0 = arith.constant 0 : i32
    return %c0_i32 : i32
  }
  func.func @transform_2(%arg0: i32) -> (i32, i32) {
    %c0_i32 = arith.constant 0 : i32
    %c0_i32_0 = arith.constant 0 : i32
    return %c0_i32, %arg0 : i32, i32
  }
  func.func @transform_3(%arg0: i32) -> (i32, i32) {
    %c0_i32 = arith.constant 0 : i32
    %c0_i32_0 = arith.constant 0 : i32
    return %c0_i32, %arg0 : i32, i32
  }
}

</mosaic_0001>

<llo_original>
// kernel: tpu_custom_call.1
$region0: #{tpu_custom_call.1}
  #allocation0 [shape = 'u32[]', space=smem, size = 0x4, offset = 0x4, fixed_abs, tag = 'smem constant byte address 0x4 - core index']
  #allocation1 [shape = 'u32[144,128]{1,0:T(1,128)}', space=vmem, size = 0x12000, scoped, tag = 'internal scratch']
  #allocation2 [shape = 'f32[1]{0:T(128)S(6)}', space=smem, size = 0x200, scoped, tag = 'scoped memory for tpu_custom_call.1']
  %s0 = inlined_call_operand.vmem [shape: f32[12], index: 0, kind: input, shape index: {}]
  %s1 = inlined_call_operand.<no memory space> [shape: f32[1], index: 1, kind: input, shape index: {}]
  %s2 = inlined_call_operand.hbm [shape: f32[12,384], index: 2, kind: input, shape index: {}]
  %s3 = inlined_call_operand.hbm [shape: f32[1,384], index: 3, kind: output, shape index: {}]
  %s4 = sld [smem:[#allocation0]]
  $region53: #{tpu_custom_call.1} parent=0
    _
  %s6 = ssub.s32 1, %s4
  %s7 = scalar_select 0, %s6, %s4
  %8 = sst [smem:[#allocation2]] %s1
  $region1: #{tpu_custom_call.1} parent=0
    #allocation3 [shape = 'u8[512]{0}', space=smem, size = 0x200, scoped, tag = 'input window, operand 0, single buffered']
    #allocation4 [shape = 's32[2]{0}', space=sflag, size = 0x8, scoped, tag = 'scoped memory for tpu_custom_call.1']
    #allocation5 [shape = 's32[2]{0}', space=sflag, size = 0x8, scoped, tag = 'scoped memory for tpu_custom_call.1']
    #allocation6 [shape = 's32[2]{0}', space=sflag, size = 0x8, scoped, tag = 'scoped memory for tpu_custom_call.1']
    #allocation7 [shape = 'u8[16384]{0}', space=vmem, size = 0x4000, scoped, tag = 'input window, operand 2']
    #allocation8 [shape = 'u8[1024]{0}', space=vmem, size = 0x400, scoped, tag = 'output window, operand 0']
    %9 = vsyncpa [#allocation6], 0
    %10 = vsyncpa [#allocation4], 0
    %s11 = scalar_lea.sflag [#allocation4], 1
    %12 = vsyncpa %s11, 0
    %13 = vsyncpa [#allocation5], 0
    %s14 = scalar_lea.sflag [#allocation5], 1
    %15 = vsyncpa %s14, 0
    loop: start=0, step=1, limit=5
    $region2: #{tpu_custom_call.1} parent=1 // loop_pre_header
      _
    $region3: #{tpu_custom_call.1} parent=1 // loop_header
      %s17 = sphi 0, %s21
      %p18 = scmp.ge.s32.totalorder %s17, 5
      %s25 = sphi 0, %s25
      %s27 = sphi 0, %s25
      %s28 = sphi 0, %s27
      %s42 = sphi 0, %s28
      %s46 = sphi 0, %s46
      %s48 = sphi 0, %s46
      %s49 = sphi 0, %s48
      %s63 = sphi 0, %s49
      %s69 = sphi 0, %s71
      %s72 = sphi 0, %s69
      %s73 = sphi 0, %s72
      %s89 = sphi 0, %s73
      %s95 = sphi 0, %s97
      %s98 = sphi 0, %s95
      %s99 = sphi 0, %s98
      %s115 = sphi 0, %s99
    $region4: #{tpu_custom_call.1} parent=1 // loop_header_branch
      %20 = sbr.rel (%p18) target = $region8
    $region5: #{tpu_custom_call.1} parent=1 // loop_body
      %s22 = ssub.s32 %s17, 1
      %s23 = ssub.s32 %s17, 2
      %s24 = sadd.s32 %s17, 1
      %s26 = sadd.s32 %s25, 1
      %p29 = scmp.eq.s32.totalorder %s17, 2
      %p30 = scmp.ne.s32.totalorder %s25, %s27
      %p31 = scmp.eq.s32.totalorder %s17, 0
      %p32 = por %p30, %p31
      %p33 = scmp.ne.s32.totalorder %s25, %s27
      %p34 = scmp.eq.s32.totalorder %s22, 2
      %p35 = por %p33, %p34
      %p36 = scmp.ne.s32.totalorder %s27, %s28
      %p37 = scmp.eq.s32.totalorder %s22, 0
      %p38 = por %p36, %p37
      %p39 = scmp.ne.s32.totalorder %s27, %s28
      %p40 = scmp.eq.s32.totalorder %s23, 2
      %p41 = por %p39, %p40
      %p43 = scmp.ne.s32.totalorder %s28, %s42
      %p44 = scmp.eq.s32.totalorder %s23, 0
      %p45 = por %p43, %p44
      %s47 = sadd.s32 %s46, 1
      %p50 = scmp.eq.s32.totalorder %s17, 2
      %p51 = scmp.ne.s32.totalorder %s46, %s48
      %p52 = scmp.eq.s32.totalorder %s17, 0
      %p53 = por %p51, %p52
      %p54 = scmp.ne.s32.totalorder %s46, %s48
      %p55 = scmp.eq.s32.totalorder %s22, 2
      %p56 = por %p54, %p55
      %p57 = scmp.ne.s32.totalorder %s48, %s49
      %p58 = scmp.eq.s32.totalorder %s22, 0
      %p59 = por %p57, %p58
      %p60 = scmp.ne.s32.totalorder %s48, %s49
      %p61 = scmp.eq.s32.totalorder %s23, 2
      %p62 = por %p60, %p61
      %p64 = scmp.ne.s32.totalorder %s49, %s63
      %p65 = scmp.eq.s32.totalorder %s23, 0
      %p66 = por %p64, %p65
      %s67 = ssub.s32 %s17, %s24
      %p68 = scmp.eq.s32.totalorder %s67, 0
      %s70 = sadd.s32 %s69, 1
      %s71 = scalar_select %p68, %s69, %s70
      %p74 = pneg %p68
      %p75 = scmp.eq.s32.totalorder %s17, 2
      %p76 = por %p74, %p75
      %p77 = scmp.ne.s32.totalorder %s69, %s72
      %p78 = scmp.eq.s32.totalorder %s17, 0
      %p79 = por %p77, %p78
      %p80 = scmp.ne.s32.totalorder %s69, %s72
      %p81 = scmp.eq.s32.totalorder %s22, 2
      %p82 = por %p80, %p81
      %p83 = scmp.ne.s32.totalorder %s72, %s73
      %p84 = scmp.eq.s32.totalorder %s22, 0
      %p85 = por %p83, %p84
      %p86 = scmp.ne.s32.totalorder %s72, %s73
      %p87 = scmp.eq.s32.totalorder %s23, 2
      %p88 = por %p86, %p87
      %p90 = scmp.ne.s32.totalorder %s73, %s89
      %p91 = scmp.eq.s32.totalorder %s23, 0
      %p92 = por %p90, %p91
      %s93 = ssub.s32 %s17, %s24
      %p94 = scmp.eq.s32.totalorder %s93, 0
      %s96 = sadd.s32 %s95, 1
      %s97 = scalar_select %p94, %s95, %s96
      %p100 = pneg %p94
      %p101 = scmp.eq.s32.totalorder %s17, 2
      %p102 = por %p100, %p101
      %p103 = scmp.ne.s32.totalorder %s95, %s98
      %p104 = scmp.eq.s32.totalorder %s17, 0
      %p105 = por %p103, %p104
      %p106 = scmp.ne.s32.totalorder %s95, %s98
      %p107 = scmp.eq.s32.totalorder %s22, 2
      %p108 = por %p106, %p107
      %p109 = scmp.ne.s32.totalorder %s98, %s99
      %p110 = scmp.eq.s32.totalorder %s22, 0
      %p111 = por %p109, %p110
      %p112 = scmp.ne.s32.totalorder %s98, %s99
      %p113 = scmp.eq.s32.totalorder %s23, 2
      %p114 = por %p112, %p113
      %p116 = scmp.ne.s32.totalorder %s99, %s115
      %p117 = scmp.eq.s32.totalorder %s23, 0
      %p118 = por %p116, %p117
      %p119 = scmp.le.s32.totalorder 1, %s17
      %p120 = scmp.lt.s32.totalorder %s17, 4
      %p121 = pnand %p119, %p120
      %p122 = pneg %p121
      // Predicated region
      $region9: #{tpu_custom_call.1} parent=5 // pred_check
        _
      $region10: #{tpu_custom_call.1} parent=5 // pred_check_branch
        %124 = sbr.rel (%p121) target = $region12
      $region11: #{tpu_custom_call.1} parent=5 // pred_region
        %s125 = ssub.s32 %s17, 1
        // Predicated region
        $region13: #{tpu_custom_call.1} parent=11 // pred_check
          %p126 = pneg %p38
        $region14: #{tpu_custom_call.1} parent=11 // pred_check_branch
          %128 = sbr.rel (%p126) target = $region16
        $region15: #{tpu_custom_call.1} parent=11 // pred_region
          %s130 = ssub.s32 16, 16
          %131 = vsyncadd [#allocation6], %s130
          %s133 = sshll.u32 %s0, 4
          %s134 = int_to_ptr.vmem [resolvable:$true] %s133
          %136 = dma.vmem_to_smem %s134, 16, [#allocation3], [#allocation6]
        $region16: #{tpu_custom_call.1} parent=11 // pred_fallthru
          _
        // Predicated region
        $region17: #{tpu_custom_call.1} parent=11 // pred_check
          %p137 = pneg %p59
        $region18: #{tpu_custom_call.1} parent=11 // pred_check_branch
          %139 = sbr.rel (%p137) target = $region20
        $region19: #{tpu_custom_call.1} parent=11 // pred_region
          _
        $region20: #{tpu_custom_call.1} parent=11 // pred_fallthru
          _
      $region12: #{tpu_custom_call.1} parent=5 // pred_fallthru
        _
      %p140 = scmp.lt.s32.totalorder %s17, 3
      // Predicated region
      $region21: #{tpu_custom_call.1} parent=5 // pred_check
        %p141 = pneg %p140
      $region22: #{tpu_custom_call.1} parent=5 // pred_check_branch
        %143 = sbr.rel (%p141) target = $region24
      $region23: #{tpu_custom_call.1} parent=5 // pred_region
        // Predicated region
        $region25: #{tpu_custom_call.1} parent=23 // pred_check
          %p144 = pneg %p79
        $region26: #{tpu_custom_call.1} parent=23 // pred_check_branch
          %146 = sbr.rel (%p144) target = $region28
        $region27: #{tpu_custom_call.1} parent=23 // pred_region
          %s147 = sand.u32 %s69, 1
          %s148 = scalar_lea.sflag [#allocation4], %s147
          %s149 = sand.u32 %s69, 1
          %s150 = smul.addr %s149, 16
          %s151 = scalar_lea.vmem [#allocation7], %s150
          %s153 = ssub.s32 256, 256
          %154 = vsyncadd %s148, %s153
          %s155 = smul.addr %s17, 128
          %s156 = scalar_lea.hbm %s2, %s155
          %s157 = sshll.u32 %s151, 4
          %s158 = int_to_ptr.vmem [resolvable:$true] %s157
          %163 = dma.hbm_to_vmem [thread:$0]  %s156, 256, %s158, %s148, 384, 128, 8
        $region28: #{tpu_custom_call.1} parent=23 // pred_fallthru
          _
      $region24: #{tpu_custom_call.1} parent=5 // pred_fallthru
        _
      %p164 = scmp.le.s32.totalorder 1, %s17
      %p165 = scmp.lt.s32.totalorder %s17, 4
      %p166 = pnand %p164, %p165
      %p167 = pneg %p166
      // Predicated region
      $region29: #{tpu_custom_call.1} parent=5 // pred_check
        _
      $region30: #{tpu_custom_call.1} parent=5 // pred_check_branch
        %169 = sbr.rel (%p166) target = $region32
      $region31: #{tpu_custom_call.1} parent=5 // pred_region
        %s170 = ssub.s32 %s17, 1
        // Predicated region
        $region33: #{tpu_custom_call.1} parent=31 // pred_check
          %p171 = pneg %p38
        $region34: #{tpu_custom_call.1} parent=31 // pred_check_branch
          %173 = sbr.rel (%p171) target = $region36
        $region35: #{tpu_custom_call.1} parent=31 // pred_region
          %174 = dma.done [#allocation6], 16
        $region36: #{tpu_custom_call.1} parent=31 // pred_fallthru
          _
        %s175 = sand.u32 %s72, 1
        %s176 = scalar_lea.sflag [#allocation4], %s175
        %s177 = sand.u32 %s72, 1
        %s178 = smul.addr %s177, 16
        %s179 = scalar_lea.vmem [#allocation7], %s178
        // Predicated region
        $region37: #{tpu_custom_call.1} parent=31 // pred_check
          %p180 = pneg %p85
        $region38: #{tpu_custom_call.1} parent=31 // pred_check_branch
          %182 = sbr.rel (%p180) target = $region40
        $region39: #{tpu_custom_call.1} parent=31 // pred_region
          %183 = dma.done %s176, 256
        $region40: #{tpu_custom_call.1} parent=31 // pred_fallthru
          _
        %184 = sfence
        %p185 = pneg %p38
        %p186 = pneg %p35
        %p187 = pneg %p59
        %p188 = pneg %p56
        %s189 = sand.u32 %s72, 1
        %s190 = scalar_lea.sflag [#allocation4], %s189
        %s191 = sand.u32 %s72, 1
        %s192 = smul.addr %s191, 16
        %s193 = scalar_lea.vmem [#allocation7], %s192
        %p194 = pneg %p85
        %p195 = pneg %p82
        %p196 = pneg %p111
        %p197 = pneg %p108
        %s198 = sand.u32 %s98, 1
        %s199 = scalar_lea.sflag [#allocation5], %s198
        %s200 = sand.u32 %s98, 1
        %s201 = scalar_lea.vmem [#allocation8], %s200
        %s202 = sld [smem:[#allocation2]]
        %v203 = vstv %s202
        %s204 = sld [smem:[#allocation3]]
        %v205 = vld [vmem:[%s179] sm:$0x1]
        %v206 = vstv %s204
        %v207 = vmul.f32 %v206, %v205
        %v208 = vadd.f32 %v203, %v207
        %s209 = sld [smem:[#allocation3 + $0x1]]
        %v210 = vld [vmem:[%s179 + $0x1] sm:$0x1]
        %v211 = vstv %s209
        %v212 = vmul.f32 %v211, %v210
        %v213 = vadd.f32 %v208, %v212
        %s214 = sld [smem:[#allocation3 + $0x2]]
        %v215 = vld [vmem:[%s179 + $0x2] sm:$0x1]
        %v216 = vstv %s214
        %v217 = vmul.f32 %v216, %v215
        %v218 = vadd.f32 %v213, %v217
        %s219 = sld [smem:[#allocation3 + $0x3]]
        %v220 = vld [vmem:[%s179 + $0x3] sm:$0x1]
        %v221 = vstv %s219
        %v222 = vmul.f32 %v221, %v220
        %v223 = vadd.f32 %v218, %v222
        %s224 = sld [smem:[#allocation3 + $0x4]]
        %v225 = vld [vmem:[%s179 + $0x4] sm:$0x1]
        %v226 = vstv %s224
        %v227 = vmul.f32 %v226, %v225
        %v228 = vadd.f32 %v223, %v227
        %s229 = sld [smem:[#allocation3 + $0x5]]
        %v230 = vld [vmem:[%s179 + $0x5] sm:$0x1]
        %v231 = vstv %s229
        %v232 = vmul.f32 %v231, %v230
        %v233 = vadd.f32 %v228, %v232
        %s234 = sld [smem:[#allocation3 + $0x6]]
        %v235 = vld [vmem:[%s179 + $0x6] sm:$0x1]
        %v236 = vstv %s234
        %v237 = vmul.f32 %v236, %v235
        %v238 = vadd.f32 %v233, %v237
        %s239 = sld [smem:[#allocation3 + $0x7]]
        %v240 = vld [vmem:[%s179 + $0x7] sm:$0x1]
        %v241 = vstv %s239
        %v242 = vmul.f32 %v241, %v240
        %v243 = vadd.f32 %v238, %v242
        %s244 = sld [smem:[#allocation3 + $0x8]]
        %v245 = vld [vmem:[%s179 + $0x8] sm:$0x1]
        %v246 = vstv %s244
        %v247 = vmul.f32 %v246, %v245
        %v248 = vadd.f32 %v243, %v247
        %s249 = sld [smem:[#allocation3 + $0x9]]
        %v250 = vld [vmem:[%s179 + $0x9] sm:$0x1]
        %v251 = vstv %s249
        %v252 = vmul.f32 %v251, %v250
        %v253 = vadd.f32 %v248, %v252
        %s254 = sld [smem:[#allocation3 + $0xa]]
        %v255 = vld [vmem:[%s179 + $0xa] sm:$0x1]
        %v256 = vstv %s254
        %v257 = vmul.f32 %v256, %v255
        %v258 = vadd.f32 %v253, %v257
        %s259 = sld [smem:[#allocation3 + $0xb]]
        %v260 = vld [vmem:[%s179 + $0xb] sm:$0x1]
        %v261 = vstv %s259
        %v262 = vmul.f32 %v261, %v260
        %v263 = vadd.f32 %v258, %v262
        %264 = vst [vmem:[%s201] sm:$0x1] %v263
        %s265 = sand.u32 %s98, 1
        %s266 = scalar_lea.sflag [#allocation5], %s265
        %s267 = sand.u32 %s98, 1
        %s268 = scalar_lea.vmem [#allocation8], %s267
        // Predicated region
        $region41: #{tpu_custom_call.1} parent=31 // pred_check
          %p269 = pneg %p108
        $region42: #{tpu_custom_call.1} parent=31 // pred_check_branch
          %271 = sbr.rel (%p269) target = $region44
        $region43: #{tpu_custom_call.1} parent=31 // pred_region
          %s273 = ssub.s32 16, 16
          %274 = vsyncadd %s266, %s273
          %s275 = smul.addr %s22, 16
          %s276 = scalar_lea.hbm %s3, %s275
          %s278 = sshll.u32 %s268, 4
          %s279 = int_to_ptr.vmem [resolvable:$true] %s278
          %281 = dma.vmem_to_hbm [thread:$0]  %s279, 16, %s276, %s266
        $region44: #{tpu_custom_call.1} parent=31 // pred_fallthru
          _
      $region32: #{tpu_custom_call.1} parent=5 // pred_fallthru
        _
      %p282 = scmp.le.s32.totalorder 2, %s17
      // Predicated region
      $region45: #{tpu_custom_call.1} parent=5 // pred_check
        %p283 = pneg %p282
      $region46: #{tpu_custom_call.1} parent=5 // pred_check_branch
        %285 = sbr.rel (%p283) target = $region48
      $region47: #{tpu_custom_call.1} parent=5 // pred_region
        %s286 = ssub.s32 %s17, 2
        // Predicated region
        $region49: #{tpu_custom_call.1} parent=47 // pred_check
          %p287 = pneg %p114
        $region50: #{tpu_custom_call.1} parent=47 // pred_check_branch
          %289 = sbr.rel (%p287) target = $region52
        $region51: #{tpu_custom_call.1} parent=47 // pred_region
          %s290 = sand.u32 %s99, 1
          %s291 = scalar_lea.sflag [#allocation5], %s290
          %s292 = sand.u32 %s99, 1
          %s293 = scalar_lea.vmem [#allocation8], %s292
          %294 = dma.done %s291, 16
        $region52: #{tpu_custom_call.1} parent=47 // pred_fallthru
          _
      $region48: #{tpu_custom_call.1} parent=5 // pred_fallthru
        _
    $region6: #{tpu_custom_call.1} parent=1 // loop_footer
      %s21 = sadd.s32 1, %s17
    $region7: #{tpu_custom_call.1} parent=1 // loop_footer_branch
      %16 = sbr.rel target = $region3
    $region8: #{tpu_custom_call.1} parent=1 // loop_exit
      _
    %295 = vsyncpa [#allocation4], 1
    %s296 = scalar_lea.sflag [#allocation4], 1
    %297 = vsyncpa %s296, 1
    %298 = vsyncpa [#allocation5], 1
    %s299 = scalar_lea.sflag [#allocation5], 1
    %300 = vsyncpa %s299, 1
    %301 = vsyncpa [#allocation6], 1
    %s302 = scalar_lea.sflag [#allocation6], 1
    %303 = vsyncpa %s302, 1

</llo_original>
